<compile_context>
chip_gen: v7x
topology: tpu7x:2x2x1
jax: 0.10.0
libtpu: 0.0.40
codegen_flags: <defaults>
</compile_context>

<pallas_src>
import functools

import jax
import jax.numpy as jnp
from jax.experimental import pallas as pl
from jax.experimental.pallas import tpu as pltpu


# ----------------------------- Pallas kernel -------------------------------

def _xpos_kernel(x_ref, cos_ref, sin_ref, o_ref):
    # x_ref / o_ref: (tR, W)  (batch dim squeezed away by the BlockSpec).
    # cos_ref / sin_ref: either (tR, W) tiles or the full VMEM-resident (R_pad, W)
    # tables; rotate_every_two's -/+ sign is already folded into sin.
    x = x_ref[...].astype(jnp.float32)
    tR, W = x.shape

    if cos_ref.shape[0] == tR:
        # Tiled tables: the block already matches the x row tile.
        cos = cos_ref[...]
        sin = sin_ref[...]
    else:
        # VMEM-resident tables: slice the rows of the current row tile.  Offsets are
        # multiples of tR (itself a multiple of 16), and the tables were padded in
        # the wrapper to num_row_tiles * tR rows, so the slice is never OOB.
        r0 = pl.multiple_of(pl.program_id(0) * tR, tR)
        cos = cos_ref[pl.ds(r0, tR), :]
        sin = sin_ref[pl.ds(r0, tR), :]
    cos = cos.astype(jnp.float32)
    sin = sin.astype(jnp.float32)

    # rotate_every_two(x)[2i] = -x[2i+1], [2i+1] = x[2i]  (the sign lives in `sin`)
    # -> pairwise swap of adjacent lanes.  pltpu.roll needs non-negative shifts, so
    #    roll by W-1 stands in for roll by -1.  W is even, so the circular wrap
    #    lanes are never selected (lane 0 is even -> takes nxt; lane W-1 is odd ->
    #    takes prv).  Both rolls go to the XLU slot (free under the HBM bound).
    nxt = pltpu.roll(x, shift=W - 1, axis=1)   # nxt[j] = x[(j + 1) % W]
    prv = pltpu.roll(x, shift=1, axis=1)       # prv[j] = x[(j - 1) % W]
    lane = jax.lax.broadcasted_iota(jnp.int32, x.shape, dimension=1)
    swapped = jnp.where((lane & 1) == 0, nxt, prv)

    o_ref[...] = (x * cos + swapped * sin).astype(o_ref.dtype)


# ------------------------ plain-JAX table precompute ------------------------

def _xpos_tables(length, offset, head_dim, scale_base, downscale, dtype):
    """Returns (cos_dup, signed_sin_dup), each (length, head_dim) in `dtype`."""
    # buffer registered in __init__: (arange(0, D, 2) + 0.4*D) / (1.4*D)
    scale_buf = (jnp.arange(0, head_dim, 2) + 0.4 * head_dim) / (1.4 * head_dim)

    total = length + offset
    min_pos = -total // 2                      # python floor div (matches torch)
    max_pos = total + min_pos
    power = jnp.arange(min_pos, max_pos).astype(jnp.float32) / scale_base
    scale = scale_buf[None, :] ** power[:, None]            # (L', D/2)

    seq_len, dim = scale.shape
    inv_freq = 1.0 / 10000 ** (jnp.arange(0, dim) / dim)
    sinusoid = jnp.arange(seq_len, dtype=jnp.float32)[:, None] * inv_freq[None, :]
    sin, cos = jnp.sin(sinusoid), jnp.cos(sinusoid)

    if seq_len > length:
        scale, sin, cos = scale[-length:], sin[-length:], cos[-length:]
    if downscale:
        scale = 1.0 / scale

    # duplicate_interleave((sin|cos) * scale) -> (L, D)
    sin_d = jnp.repeat(sin * scale, 2, axis=-1)
    cos_d = jnp.repeat(cos * scale, 2, axis=-1)

    # fold the (-x2, x1) sign pattern of rotate_every_two into sin
    sign = jnp.where(jnp.arange(head_dim) % 2 == 0, -1.0, 1.0)
    signed_sin = sin_d * sign
    return cos_d.astype(dtype), signed_sin.astype(dtype)


# --------------------------- layout / tiling picks ---------------------------

_ROW_GRAIN = 16  # multiple of 8 (f32 sublanes) and of the bf16 packed-sublane pair


def _choose_layout(L, D):
    """(W, R, pad): last-dim width (multiple of 128), rows, flat pad per batch."""
    N = L * D
    for w in (1024, 512, 256, 128):           # any even width preserves (2i, 2i+1)
        if N % w == 0:
            return w, N // w, 0
    # No lane-dense divisor (e.g. odd L with D=64): pad the flat per-batch length to
    # a multiple of 128 instead of falling back to a sub-128 (masked-store) layout.
    P = ((N + 127) // 128) * 128
    return 128, P // 128, P - N


def _pick_row_tile(R, W, itemsize, block_bytes):
    """Rows per block: ~block_bytes of x per block, even row-tile count when cheap."""
    if R <= _ROW_GRAIN:
        return R
    g = _ROW_GRAIN
    tR = max((block_bytes // (W * itemsize)) // g * g, g)
    if tR >= R:
        return R
    # Prefer a tile that divides R exactly (avoids a masked tail block).
    for t in range(tR, max(tR // 2, g) - 1, -g):
        if R % t == 0:
            tR = t
            break
    # v7x has 2 TensorCores: an even number of row tiles gives a balanced split.
    num_r = -(-R // tR)
    if num_r % 2 == 1 and tR > g:
        for t in range(tR - g, g - 1, -g):
            if (-(-R // t)) % 2 == 0:
                tR = t
                break
    return tR


def _plan_vmem(R_pad, W, tR, x_itemsize, tbl_itemsize):
    """Decide whether cos/sin are VMEM-resident and pick vmem_limit_bytes."""
    blk = tR * W
    io_bytes = 4 * blk * x_itemsize                 # x + out blocks, double-buffered
    tiled_tbl = 4 * blk * tbl_itemsize              # cos + sin tiles, double-buffered
    resident_tbl = 4 * R_pad * W * tbl_itemsize     # cos + sin full (2 buffers each)
    budget = 24 << 20                               # conservative on v7x (64 MiB/TC)
    resident = (io_bytes + resident_tbl) <= budget
    used = io_bytes + (resident_tbl if resident else tiled_tbl)
    # Explicit scoped-VMEM limit: above v5e's 16 MiB default when we need it, with
    # headroom for Mosaic internal scratch, capped well below v7x's 64 MiB/TC.
    vmem_limit = int(min(max(2 * used + (4 << 20), 24 << 20), 48 << 20))
    return resident, vmem_limit


# ------------------------------ public wrapper ------------------------------

@functools.partial(
    jax.jit,
    static_argnames=("offset", "downscale", "scale_base", "precise_tables",
                     "donate", "block_bytes"))
def xpos_forward(x, offset=0, downscale=False, scale_base=512,
                 precise_tables=False, donate=False, block_bytes=2 << 20):
    B, L, D = x.shape
    assert D % 2 == 0, "XPOS requires an even head_dim"

    # bf16 tables by default: halves table HBM traffic (same exponent range as f32,
    # so the scale**power term cannot newly under/overflow); math stays f32 in-kernel.
    table_dtype = jnp.float32 if precise_tables else jnp.bfloat16
    cos_d, signed_sin = _xpos_tables(L, offset, D, scale_base, downscale, table_dtype)

    # Lane-dense layout: (B, L, D) -> (B, R, W), tables reshaped identically.
    W, R, pad = _choose_layout(L, D)
    x_flat = x.reshape(B, L * D)
    cos_flat = cos_d.reshape(L * D)
    sin_flat = signed_sin.reshape(L * D)
    if pad:
        x_flat = jnp.pad(x_flat, ((0, 0), (0, pad)))
        cos_flat = jnp.pad(cos_flat, ((0, pad),))
        sin_flat = jnp.pad(sin_flat, ((0, pad),))
    x_r = x_flat.reshape(B, R, W)

    tR = _pick_row_tile(R, W, x.dtype.itemsize, block_bytes)
    num_r = pl.cdiv(R, tR)
    R_pad = num_r * tR

    # Pad the tables to exactly num_r * tR rows so that (a) the resident in-kernel
    # slice is never OOB and (b) the tiled table blocks have no masked tail.
    cos_r = cos_flat.reshape(R, W)
    sin_r = sin_flat.reshape(R, W)
    if R_pad > R:
        cos_r = jnp.pad(cos_r, ((0, R_pad - R), (0, 0)))
        sin_r = jnp.pad(sin_r, ((0, R_pad - R), (0, 0)))

    resident, vmem_limit = _plan_vmem(R_pad, W, tR, x.dtype.itemsize,
                                      cos_r.dtype.itemsize)
    if resident:
        # Full VMEM-resident tables: constant block index -> DMA'd once per kernel.
        tbl_spec = pl.BlockSpec((R_pad, W), lambda i, b: (0, 0))
    else:
        # Tiled tables: batch-innermost grid keeps the block index constant across
        # consecutive steps, so their re-DMA across the batch axis is skipped.
        tbl_spec = pl.BlockSpec((tR, W), lambda i, b: (i, 0))

    out = pl.pallas_call(
        _xpos_kernel,
        out_shape=jax.ShapeDtypeStruct((B, R, W), x.dtype),
        grid=(num_r, B),                       # batch innermost
        in_specs=[
            pl.BlockSpec((None, tR, W), lambda i, b: (b, i, 0)),  # x (batch squeezed)
            tbl_spec,                                             # cos
            tbl_spec,                                             # signed sin
        ],
        out_specs=pl.BlockSpec((None, tR, W), lambda i, b: (b, i, 0)),
        compiler_params=pltpu.CompilerParams(
            dimension_semantics=("parallel", "parallel"),
            vmem_limit_bytes=vmem_limit),
        # Elementwise per block, so in-place is safe; only enabled when the caller
        # can donate x (otherwise XLA inserts a defensive copy).
        input_output_aliases=({0: 0} if donate else {}),
    )(x_r, cos_r, sin_r)

    out = out.reshape(B, R * W)
    if pad:
        out = out[:, :L * D]
    return out.reshape(B, L, D)


# --------------------------- pure-JAX reference -----------------------------

def _xpos_reference(x, offset=0, downscale=False, scale_base=512):
    B, L, D = x.shape
    scale_buf = (jnp.arange(0, D, 2) + 0.4 * D) / (1.4 * D)
    total = L + offset
    min_pos = -total // 2
    max_pos = total + min_pos
    power = jnp.arange(min_pos, max_pos).astype(jnp.float32) / scale_base
    scale = scale_buf[None, :] ** power[:, None]
    seq_len, dim = scale.shape
    inv_freq = 1.0 / 10000 ** (jnp.arange(0, dim) / dim)
    sinusoid = jnp.arange(seq_len, dtype=jnp.float32)[:, None] * inv_freq[None, :]
    sin, cos = jnp.sin(sinusoid), jnp.cos(sinusoid)
    if seq_len > L:
        scale, sin, cos = scale[-L:], sin[-L:], cos[-L:]
    if downscale:
        scale = 1.0 / scale
    sin_d = jnp.repeat(sin * scale, 2, axis=-1)
    cos_d = jnp.repeat(cos * scale, 2, axis=-1)
    x1, x2 = x[:, :, ::2], x[:, :, 1::2]
    rot = jnp.stack((-x2, x1), axis=-1).reshape(B, L, D)
    return x * cos_d + rot * sin_d


# ----------------------------------- main -----------------------------------

if __name__ == "__main__":
    key = jax.random.PRNGKey(0)

    # 1) Small head_dim (lane-dense repack): B=2, L=8, D=32, default bf16 tables.
    B, L, D = 2, 8, 32
    x = jax.random.normal(key, (B, L, D), dtype=jnp.float32)
    out = xpos_forward(x)
    jax.block_until_ready(out)
    ref = _xpos_reference(x)
    assert out.shape == x.shape and out.dtype == x.dtype
    assert jnp.allclose(out, ref, atol=3e-2, rtol=3e-2), "mismatch (bf16 tables)"

    # Same shape with f32 tables (tight tolerance).
    out_hp = xpos_forward(x, precise_tables=True)
    jax.block_until_ready(out_hp)
    assert jnp.allclose(out_hp, ref, atol=1e-4, rtol=1e-4), "mismatch (f32 tables)"

    # 2) offset > 0 (table-slicing branch) and downscale=True.
    out2 = xpos_forward(x, offset=4, downscale=True, precise_tables=True)
    jax.block_until_ready(out2)
    ref2 = _xpos_reference(x, offset=4, downscale=True)
    assert jnp.allclose(out2, ref2, atol=1e-4, rtol=1e-4), "mismatch (offset/downscale)"

    # 3) bf16 input, multiple row tiles (exercises the VMEM-resident table slice and
    #    the input/output aliasing path).
    B3, L3, D3 = 2, 256, 128
    x3 = jax.random.normal(jax.random.PRNGKey(1), (B3, L3, D3), dtype=jnp.bfloat16)
    out3 = xpos_forward(x3, block_bytes=32 * 1024, donate=True)
    jax.block_until_ready(out3)
    ref3 = _xpos_reference(x3.astype(jnp.float32))
    assert out3.dtype == jnp.bfloat16
    assert jnp.allclose(out3.astype(jnp.float32), ref3, atol=5e-2, rtol=5e-2), \
        "mismatch (bf16 / multi-tile)"

    # 4) Awkward shape with no 128-multiple divisor of L*D (padded lane-dense path).
    B4, L4, D4 = 2, 5, 24
    x4 = jax.random.normal(jax.random.PRNGKey(2), (B4, L4, D4), dtype=jnp.float32)
    out4 = xpos_forward(x4, precise_tables=True)
    jax.block_until_ready(out4)
    ref4 = _xpos_reference(x4)
    assert jnp.allclose(out4, ref4, atol=1e-4, rtol=1e-4), "mismatch (padded layout)"

    print("KERNEL_OK")
</pallas_src>

<mosaic_0001>
module attributes {stable_mosaic.version = 11 : i64} {
  func.func @_xpos_kernel(%arg0: i32, %arg1: i32, %arg2: memref<1x1x256xf32, #tpu.memory_space<vmem>>, %arg3: memref<1x256xbf16, #tpu.memory_space<vmem>>, %arg4: memref<1x256xbf16, #tpu.memory_space<vmem>>, %arg5: memref<1x1x256xf32, #tpu.memory_space<vmem>>) attributes {dimension_semantics = [#tpu.dimension_semantics<parallel>, #tpu.dimension_semantics<parallel>], iteration_bounds = array<i64: 1, 2>, scalar_prefetch = 0 : i64, scratch_operands = 0 : i64, tpu.core_type = #tpu.core_type<tc>, window_params = [{transform_indices = @transform_0, window_bounds = array<i64: 1, 1, 256>}, {pipeline_mode = #tpu.pipeline_mode<synchronous>, transform_indices = @transform_1, window_bounds = array<i64: 1, 256>}, {pipeline_mode = #tpu.pipeline_mode<synchronous>, transform_indices = @transform_2, window_bounds = array<i64: 1, 256>}, {transform_indices = @transform_3, window_bounds = array<i64: 1, 1, 256>}]} {
    %c0 = arith.constant 0 : index
    %c0_0 = arith.constant 0 : index
    %c0_1 = arith.constant 0 : index
    %0 = vector.load %arg2[%c0, %c0_0, %c0_1] : memref<1x1x256xf32, #tpu.memory_space<vmem>>, vector<1x1x256xf32>
    %1 = vector.shape_cast %0 : vector<1x1x256xf32> to vector<1x256xf32>
    %c0_2 = arith.constant 0 : index
    %c0_3 = arith.constant 0 : index
    %2 = vector.load %arg3[%c0_2, %c0_3] : memref<1x256xbf16, #tpu.memory_space<vmem>>, vector<1x256xbf16>
    %c0_4 = arith.constant 0 : index
    %c0_5 = arith.constant 0 : index
    %3 = vector.load %arg4[%c0_4, %c0_5] : memref<1x256xbf16, #tpu.memory_space<vmem>>, vector<1x256xbf16>
    %4 = arith.extf %2 : vector<1x256xbf16> to vector<1x256xf32>
    %5 = arith.extf %3 : vector<1x256xbf16> to vector<1x256xf32>
    %c255_i32 = arith.constant 255 : i32
    %6 = tpu.dynamic_rotate %1 by %c255_i32 dim 1 : vector<1x256xf32>, i32 -> vector<1x256xf32>
    %c1_i32 = arith.constant 1 : i32
    %7 = tpu.dynamic_rotate %1 by %c1_i32 dim 1 : vector<1x256xf32>, i32 -> vector<1x256xf32>
    %8 = tpu.iota {dimensions = array<i32: 1>} : vector<1x256xi32>
    %c1_i32_6 = arith.constant 1 : i32
    %9 = vector.broadcast %c1_i32_6 : i32 to vector<1x256xi32>
    %10 = arith.andi %8, %9 : vector<1x256xi32>
    %c0_i32 = arith.constant 0 : i32
    %11 = vector.broadcast %c0_i32 : i32 to vector<1x256xi32>
    %12 = arith.cmpi eq, %10, %11 : vector<1x256xi32>
    %13 = arith.select %12, %6, %7 : vector<1x256xi1>, vector<1x256xf32>
    %14 = arith.mulf %1, %4 : vector<1x256xf32>
    %15 = arith.mulf %13, %5 : vector<1x256xf32>
    %16 = arith.addf %14, %15 : vector<1x256xf32>
    %c0_7 = arith.constant 0 : index
    %c0_8 = arith.constant 0 : index
    %c0_9 = arith.constant 0 : index
    %17 = vector.load %arg5[%c0_7, %c0_8, %c0_9] : memref<1x1x256xf32, #tpu.memory_space<vmem>>, vector<1x1x256xf32>
    %18 = vector.shape_cast %17 : vector<1x1x256xf32> to vector<1x256xf32>
    %19 = vector.shape_cast %16 : vector<1x256xf32> to vector<1x1x256xf32>
    tpu.vector_store %arg5[%c0_7, %c0_8, %c0_9], %19 {strides = array<i32>} : memref<1x1x256xf32, #tpu.memory_space<vmem>>, vector<1x1x256xf32>,
    return
  }
  func.func @transform_0(%arg0: i32, %arg1: i32) -> (i32, i32, i32) {
    %c0_i32 = arith.constant 0 : i32
    %c0_i32_0 = arith.constant 0 : i32
    return %arg1, %arg0, %c0_i32 : i32, i32, i32
  }
  func.func @transform_1(%arg0: i32, %arg1: i32) -> (i32, i32) {
    %c0_i32 = arith.constant 0 : i32
    %c0_i32_0 = arith.constant 0 : i32
    %c0_i32_1 = arith.constant 0 : i32
    return %c0_i32, %c0_i32_0 : i32, i32
  }
  func.func @transform_2(%arg0: i32, %arg1: i32) -> (i32, i32) {
    %c0_i32 = arith.constant 0 : i32
    %c0_i32_0 = arith.constant 0 : i32
    %c0_i32_1 = arith.constant 0 : i32
    return %c0_i32, %c0_i32_0 : i32, i32
  }
  func.func @transform_3(%arg0: i32, %arg1: i32) -> (i32, i32, i32) {
    %c0_i32 = arith.constant 0 : i32
    %c0_i32_0 = arith.constant 0 : i32
    return %arg1, %arg0, %c0_i32 : i32, i32, i32
  }
}

</mosaic_0001>

<llo_original>
// kernel: xpos_forward.1
$region0: #{xpos_forward.1}
  #allocation0 [shape = 'u32[]', space=smem, size = 0x4, offset = 0x4, fixed_abs, tag = 'smem constant byte address 0x4 - core index']
  #allocation1 [shape = 'u32[144,128]{1,0:T(1,128)}', space=vmem, size = 0x12000, scoped, tag = 'internal scratch']
  %s0 = inlined_call_operand.vmem [shape: f32[2,1,256], index: 0, kind: input, shape index: {}]
  %s1 = inlined_call_operand.vmem [shape: bf16[1,256], index: 1, kind: input, shape index: {}]
  %s2 = inlined_call_operand.vmem [shape: bf16[1,256], index: 2, kind: input, shape index: {}]
  %s3 = inlined_call_operand.vmem [shape: f32[2,1,256], index: 3, kind: output, shape index: {}]
  %s4 = sld [smem:[#allocation0]]
  $region45: #{xpos_forward.1} parent=0
    _
  %s6 = ssub.s32 1, %s4
  %s7 = scalar_select 0, %s6, %s4
  loop: start=0, step=1, limit=4
  $region2: #{xpos_forward.1} parent=0 // loop_pre_header
    _
  $region3: #{xpos_forward.1} parent=0 // loop_header
    %s9 = sphi 0, %s13
    %p10 = scmp.ge.s32.totalorder %s9, 4
    %s16 = sphi 0, %s28
    %s17 = sphi 0, %s24
    %s18 = sphi 0, %s16
    %s19 = sphi 0, %s17
    %s20 = sphi 0, %s18
    %s21 = sphi 0, %s19
    %s33 = sphi 0, %s35
    %s36 = sphi 0, %s33
    %s37 = sphi 0, %s36
    %s53 = sphi 0, %s37
    %s57 = sphi 0, %s57
    %s59 = sphi 0, %s57
    %s60 = sphi 0, %s59
    %s74 = sphi 0, %s60
    %s78 = sphi 0, %s78
    %s80 = sphi 0, %s78
    %s81 = sphi 0, %s80
    %s95 = sphi 0, %s81
    %s103 = sphi 0, %s105
    %s106 = sphi 0, %s103
    %s107 = sphi 0, %s106
    %s123 = sphi 0, %s107
  $region4: #{xpos_forward.1} parent=0 // loop_header_branch
    %12 = sbr.rel (%p10) target = $region8
  $region5: #{xpos_forward.1} parent=0 // loop_body
    %s14 = ssub.s32 %s9, 1
    %s15 = ssub.s32 %s9, 2
    %s22 = sadd.s32 1, %s17
    %p23 = scmp.ge.s32.totalorder %s22, 2
    %s24 = scalar_select %p23, 0, %s22
    %s25 = sadd.s32 1, %s16
    %s26 = scalar_select %p23, %s25, %s16
    %p27 = scmp.ge.s32.totalorder %s26, 1
    %s28 = scalar_select %p27, 0, %s26
    %s29 = ssub.s32 %s17, %s24
    %s30 = ssub.s32 %s16, %s28
    %s31 = sor.u32 %s29, %s30
    %p32 = scmp.eq.s32.totalorder %s31, 0
    %s34 = sadd.s32 %s33, 1
    %s35 = scalar_select %p32, %s33, %s34
    %p38 = pneg %p32
    %p39 = scmp.eq.s32.totalorder %s9, 1
    %p40 = por %p38, %p39
    %p41 = scmp.ne.s32.totalorder %s33, %s36
    %p42 = scmp.eq.s32.totalorder %s9, 0
    %p43 = por %p41, %p42
    %p44 = scmp.ne.s32.totalorder %s33, %s36
    %p45 = scmp.eq.s32.totalorder %s14, 1
    %p46 = por %p44, %p45
    %p47 = scmp.ne.s32.totalorder %s36, %s37
    %p48 = scmp.eq.s32.totalorder %s14, 0
    %p49 = por %p47, %p48
    %p50 = scmp.ne.s32.totalorder %s36, %s37
    %p51 = scmp.eq.s32.totalorder %s15, 1
    %p52 = por %p50, %p51
    %p54 = scmp.ne.s32.totalorder %s37, %s53
    %p55 = scmp.eq.s32.totalorder %s15, 0
    %p56 = por %p54, %p55
    %s58 = sadd.s32 %s57, 1
    %p61 = scmp.eq.s32.totalorder %s9, 1
    %p62 = scmp.ne.s32.totalorder %s57, %s59
    %p63 = scmp.eq.s32.totalorder %s9, 0
    %p64 = por %p62, %p63
    %p65 = scmp.ne.s32.totalorder %s57, %s59
    %p66 = scmp.eq.s32.totalorder %s14, 1
    %p67 = por %p65, %p66
    %p68 = scmp.ne.s32.totalorder %s59, %s60
    %p69 = scmp.eq.s32.totalorder %s14, 0
    %p70 = por %p68, %p69
    %p71 = scmp.ne.s32.totalorder %s59, %s60
    %p72 = scmp.eq.s32.totalorder %s15, 1
    %p73 = por %p71, %p72
    %p75 = scmp.ne.s32.totalorder %s60, %s74
    %p76 = scmp.eq.s32.totalorder %s15, 0
    %p77 = por %p75, %p76
    %s79 = sadd.s32 %s78, 1
    %p82 = scmp.eq.s32.totalorder %s9, 1
    %p83 = scmp.ne.s32.totalorder %s78, %s80
    %p84 = scmp.eq.s32.totalorder %s9, 0
    %p85 = por %p83, %p84
    %p86 = scmp.ne.s32.totalorder %s78, %s80
    %p87 = scmp.eq.s32.totalorder %s14, 1
    %p88 = por %p86, %p87
    %p89 = scmp.ne.s32.totalorder %s80, %s81
    %p90 = scmp.eq.s32.totalorder %s14, 0
    %p91 = por %p89, %p90
    %p92 = scmp.ne.s32.totalorder %s80, %s81
    %p93 = scmp.eq.s32.totalorder %s15, 1
    %p94 = por %p92, %p93
    %p96 = scmp.ne.s32.totalorder %s81, %s95
    %p97 = scmp.eq.s32.totalorder %s15, 0
    %p98 = por %p96, %p97
    %s99 = ssub.s32 %s17, %s24
    %s100 = ssub.s32 %s16, %s28
    %s101 = sor.u32 %s99, %s100
    %p102 = scmp.eq.s32.totalorder %s101, 0
    %s104 = sadd.s32 %s103, 1
    %s105 = scalar_select %p102, %s103, %s104
    %p108 = pneg %p102
    %p109 = scmp.eq.s32.totalorder %s9, 1
    %p110 = por %p108, %p109
    %p111 = scmp.ne.s32.totalorder %s103, %s106
    %p112 = scmp.eq.s32.totalorder %s9, 0
    %p113 = por %p111, %p112
    %p114 = scmp.ne.s32.totalorder %s103, %s106
    %p115 = scmp.eq.s32.totalorder %s14, 1
    %p116 = por %p114, %p115
    %p117 = scmp.ne.s32.totalorder %s106, %s107
    %p118 = scmp.eq.s32.totalorder %s14, 0
    %p119 = por %p117, %p118
    %p120 = scmp.ne.s32.totalorder %s106, %s107
    %p121 = scmp.eq.s32.totalorder %s15, 1
    %p122 = por %p120, %p121
    %p124 = scmp.ne.s32.totalorder %s107, %s123
    %p125 = scmp.eq.s32.totalorder %s15, 0
    %p126 = por %p124, %p125
    %p127 = scmp.le.s32.totalorder 1, %s9
    %p128 = scmp.lt.s32.totalorder %s9, 3
    %p129 = pnand %p127, %p128
    %p130 = pneg %p129
    // Predicated region
    $region9: #{xpos_forward.1} parent=5 // pred_check
      _
    $region10: #{xpos_forward.1} parent=5 // pred_check_branch
      %132 = sbr.rel (%p129) target = $region12
    $region11: #{xpos_forward.1} parent=5 // pred_region
      %s133 = ssub.s32 %s9, 1
      // Predicated region
      $region13: #{xpos_forward.1} parent=11 // pred_check
        %p134 = pneg %p70
      $region14: #{xpos_forward.1} parent=11 // pred_check_branch
        %136 = sbr.rel (%p134) target = $region16
      $region15: #{xpos_forward.1} parent=11 // pred_region
        _
      $region16: #{xpos_forward.1} parent=11 // pred_fallthru
        _
      // Predicated region
      $region17: #{xpos_forward.1} parent=11 // pred_check
        %p137 = pneg %p91
      $region18: #{xpos_forward.1} parent=11 // pred_check_branch
        %139 = sbr.rel (%p137) target = $region20
      $region19: #{xpos_forward.1} parent=11 // pred_region
        _
      $region20: #{xpos_forward.1} parent=11 // pred_fallthru
        _
    $region12: #{xpos_forward.1} parent=5 // pred_fallthru
      _
    %p140 = scmp.lt.s32.totalorder %s9, 2
    // Predicated region
    $region21: #{xpos_forward.1} parent=5 // pred_check
      %p141 = pneg %p140
    $region22: #{xpos_forward.1} parent=5 // pred_check_branch
      %143 = sbr.rel (%p141) target = $region24
    $region23: #{xpos_forward.1} parent=5 // pred_region
      // Predicated region
      $region25: #{xpos_forward.1} parent=23 // pred_check
        %p144 = pneg %p43
      $region26: #{xpos_forward.1} parent=23 // pred_check_branch
        %146 = sbr.rel (%p144) target = $region28
      $region27: #{xpos_forward.1} parent=23 // pred_region
        %p147 = scmp.lt.s32.totalorder %s17, 1
        %s148 = scalar_select %p147, %s17, 1
        %p149 = scmp.lt.s32.totalorder %s16, 0
        %s150 = scalar_select %p149, %s16, 0
        %s151 = smul.addr %s150, 2
        %s152 = smul.addr %s148, 2
        %s153 = sadd.s32 %s151, %s152
        %s154 = scalar_lea.vmem %s0, %s153
      $region28: #{xpos_forward.1} parent=23 // pred_fallthru
        _
    $region24: #{xpos_forward.1} parent=5 // pred_fallthru
      _
    %p155 = scmp.le.s32.totalorder 1, %s9
    %p156 = scmp.lt.s32.totalorder %s9, 3
    %p157 = pnand %p155, %p156
    %p158 = pneg %p157
    // Predicated region
    $region29: #{xpos_forward.1} parent=5 // pred_check
      _
    $region30: #{xpos_forward.1} parent=5 // pred_check_branch
      %160 = sbr.rel (%p157) target = $region32
    $region31: #{xpos_forward.1} parent=5 // pred_region
      %s161 = ssub.s32 %s9, 1
      %p162 = scmp.lt.s32.totalorder %s19, 1
      %s163 = scalar_select %p162, %s19, 1
      %p164 = scmp.lt.s32.totalorder %s18, 0
      %s165 = scalar_select %p164, %s18, 0
      %s166 = smul.addr %s165, 2
      %s167 = smul.addr %s163, 2
      %s168 = sadd.s32 %s166, %s167
      %s169 = scalar_lea.vmem %s0, %s168
      %p170 = pneg %p49
      %p171 = pneg %p46
      %p172 = pneg %p70
      %p173 = pneg %p67
      %p174 = pneg %p91
      %p175 = pneg %p88
      %p176 = pneg %p119
      %p177 = pneg %p116
      %p178 = scmp.lt.s32.totalorder %s19, 1
      %s179 = scalar_select %p178, %s19, 1
      %p180 = scmp.lt.s32.totalorder %s18, 0
      %s181 = scalar_select %p180, %s18, 0
      %s182 = smul.addr %s181, 2
      %s183 = smul.addr %s179, 2
      %s184 = sadd.s32 %s182, %s183
      %s185 = scalar_lea.vmem %s3, %s184
      %p186 = scmp.lt.s32.totalorder %s19, 1
      %s187 = scalar_select %p186, %s19, 1
      %p188 = scmp.lt.s32.totalorder %s18, 0
      %s189 = scalar_select %p188, %s18, 0
      %s190 = smul.addr %s189, 2
      %s191 = smul.addr %s187, 2
      %s192 = sadd.s32 %s190, %s191
      %s193 = scalar_lea.vmem %s0, %s192
      %p194 = scmp.lt.s32.totalorder %s19, 1
      %s195 = scalar_select %p194, %s19, 1
      %p196 = scmp.lt.s32.totalorder %s18, 0
      %s197 = scalar_select %p196, %s18, 0
      %s198 = smul.addr %s197, 2
      %s199 = smul.addr %s195, 2
      %s200 = sadd.s32 %s198, %s199
      %s201 = scalar_lea.vmem %s3, %s200
      %v202 = vld [vmem:[%s193] sm:$0x3]
      %v203 = vld [vmem:[%s1] sm:$0x3]
      %v204 = vld [vmem:[%s2] sm:$0x3]
      %v205 = vunpack.c.l.bf16 %v203
      %v206 = vunpack.c.l.bf16 %v204
      %v208 = vlaneseq
      %v209 = vshrl.u32 %v208, 7
      %v210 = vsub.s32 0, %v209
      %v211 = vrot.slane %v202, %v210
      %v212 = vlaneseq
      %v213 = vshrl.u32 %v212, 7
      %v214 = vsub.s32 1, %v213
      %v215 = vrot.slane %v202, %v214
      %218 = vrot.lane.b32.xlu0 %v211, 127
      %v219 = vpop.permute.xlu0 %218
      %220 = vrot.lane.b32.xlu0 %v215, 127
      %v221 = vpop.permute.xlu0 %220
      %v222 = vlaneseq
      %v223 = vand.u32 %v222, 127
      %vm224 = vcmp.lt.s32.totalorder %v223, 127
      %v225 = vsel %vm224, %v219, %v221
      %v226 = vsel %vm224, %v221, %v219
      %227 = vrot.lane.b32.xlu0 %v211, 1
      %v228 = vpop.permute.xlu0 %227
      %229 = vrot.lane.b32.xlu0 %v215, 1
      %v230 = vpop.permute.xlu0 %229
      %vm231 = vcmp.lt.s32.totalorder %v223, 1
      %v232 = vsel %vm231, %v228, %v230
      %v233 = vsel %vm231, %v230, %v228
      %v234 = vadd.s32 %v223, 128
      %v235 = vand.u32 %v223, 1
      %v236 = vand.u32 %v234, 1
      %vm237 = vcmp.eq.s32.totalorder %v235, 0
      %vm238 = vcmp.eq.s32.totalorder %v236, 0
      %v239 = vsel %vm237, %v225, %v233
      %v240 = vsel %vm238, %v226, %v232
      %v243 = vunpack.c.l.s4 1966171168
      %v244 = vunpack.c.0.s8 %v243
      %v245 = vlaneseq
      %v246 = vshrl.u32 %v245, 7
      %v247 = vsub.s32 %v244, %v246
      %v248 = vrot.slane %v205, %v247
      %v250 = vmul.f32 %v202, %v248
      %v252 = vlaneseq
      %v253 = vshrl.u32 %v252, 7
      %v254 = vsub.s32 0, %v253
      %v255 = vrot.slane %v206, %v254
      %v256 = vlaneseq
      %v257 = vshrl.u32 %v256, 7
      %v258 = vsub.s32 2, %v257
      %v259 = vrot.slane %v206, %v258
      %v262 = vmul.f32 %v239, %v255
      %v263 = vmul.f32 %v240, %v259
      %v266 = vcombine.low %v262, %v263
      %v268 = vunpack.c.l.s4 1966171168
      %v269 = vunpack.c.0.s8 %v268
      %v270 = vlaneseq
      %v271 = vshrl.u32 %v270, 7
      %v272 = vsub.s32 %v269, %v271
      %v273 = vrot.slane %v266, %v272
      %v275 = vunpack.c.l.s4 1966171168
      %v276 = vunpack.c.0.s8 %v275
      %v277 = vlaneseq
      %v278 = vshrl.u32 %v277, 7
      %v279 = vsub.s32 %v276, %v278
      %v280 = vrot.slane %v273, %v279
      %v282 = vadd.f32 %v250, %v280
      %v283 = vlaneseq
      %vm284 = vcmp.ge.s32.totalorder %v283, 0
      %vm285 = vcmp.lt.s32.totalorder %v283, 256
      %vm286 = vmand %vm284, %vm285
      %287 = vst.msk [vmem:[%s201] sm:$0x3] %vm286, %v282
      %p288 = scmp.lt.s32.totalorder %s19, 1
      %s289 = scalar_select %p288, %s19, 1
      %p290 = scmp.lt.s32.totalorder %s18, 0
      %s291 = scalar_select %p290, %s18, 0
      %s292 = smul.addr %s291, 2
      %s293 = smul.addr %s289, 2
      %s294 = sadd.s32 %s292, %s293
      %s295 = scalar_lea.vmem %s3, %s294
      // Predicated region
      $region33: #{xpos_forward.1} parent=31 // pred_check
        %p296 = pneg %p116
      $region34: #{xpos_forward.1} parent=31 // pred_check_branch
        %298 = sbr.rel (%p296) target = $region36
      $region35: #{xpos_forward.1} parent=31 // pred_region
        _
      $region36: #{xpos_forward.1} parent=31 // pred_fallthru
        _
    $region32: #{xpos_forward.1} parent=5 // pred_fallthru
      _
    %p299 = scmp.le.s32.totalorder 2, %s9
    // Predicated region
    $region37: #{xpos_forward.1} parent=5 // pred_check
      %p300 = pneg %p299
    $region38: #{xpos_forward.1} parent=5 // pred_check_branch
      %302 = sbr.rel (%p300) target = $region40
    $region39: #{xpos_forward.1} parent=5 // pred_region
      %s303 = ssub.s32 %s9, 2
      // Predicated region
      $region41: #{xpos_forward.1} parent=39 // pred_check
        %p304 = pneg %p122
      $region42: #{xpos_forward.1} parent=39 // pred_check_branch
        %306 = sbr.rel (%p304) target = $region44
      $region43: #{xpos_forward.1} parent=39 // pred_region
        %p307 = scmp.lt.s32.totalorder %s21, 1
        %s308 = scalar_select %p307, %s21, 1
        %p309 = scmp.lt.s32.totalorder %s20, 0
        %s310 = scalar_select %p309, %s20, 0
        %s311 = smul.addr %s310, 2
        %s312 = smul.addr %s308, 2
        %s313 = sadd.s32 %s311, %s312
        %s314 = scalar_lea.vmem %s3, %s313
      $region44: #{xpos_forward.1} parent=39 // pred_fallthru
        _
    $region40: #{xpos_forward.1} parent=5 // pred_fallthru
      _
  $region6: #{xpos_forward.1} parent=0 // loop_footer
    %s13 = sadd.s32 1, %s9
  $region7: #{xpos_forward.1} parent=0 // loop_footer_branch
    %8 = sbr.rel target = $region3
  $region8: #{xpos_forward.1} parent=0 // loop_exit
    _

</llo_original>
